<compile_context>
chip_gen: v5e
topology: v5e:2x2
jax: 0.10.0
libtpu: 0.0.40
codegen_flags: <defaults>
</compile_context>

<pallas_src>
import jax
import jax.numpy as jnp
import numpy as np
from jax.experimental import pallas as pl
from jax.experimental.pallas import tpu as pltpu

TIME_DIM = 128              # sinusoidal positional-encoding width (fixed in the module)
EMB_DIM = 16                # nn.Embedding embedding_dim
C_OUT = TIME_DIM + EMB_DIM  # 144


def _cdiv(a, b):
    return -(-a // b)


def _largest_divisor_leq(n, cap):
    cap = int(max(1, min(n, cap)))
    for d in range(cap, 0, -1):
        if n % d == 0:
            return d
    return 1


def _device_budgets():
    """(double-buffered out-block budget bytes, vmem_limit_bytes) per TPU generation."""
    try:
        cap = int(pltpu.get_tpu_info().vmem_capacity_bytes)
    except Exception:
        cap = 64 * 1024 * 1024                      # unknown -> assume small-VMEM part
    if cap >= 96 * 1024 * 1024:                     # v5e / v6e: 128 MiB VMEM
        return 40 * 1024 * 1024, 80 * 1024 * 1024
    return 16 * 1024 * 1024, 30 * 1024 * 1024       # v7x: 64 MiB physical / 32 MiB scoped


def _sinusoid_table(L):
    """(TIME_DIM, L): row 2i = sin(pos / 10000^(2i/128)), row 2i+1 = cos(...)."""
    pos = jnp.arange(L, dtype=jnp.float32)                                   # (L,)
    div_term = 1.0 / jnp.power(
        jnp.float32(10000.0),
        jnp.arange(0, TIME_DIM, 2, dtype=jnp.float32) / TIME_DIM)            # (64,)
    ang = div_term[:, None] * pos[None, :]                                   # (64, L)
    return jnp.stack([jnp.sin(ang), jnp.cos(ang)], axis=1).reshape(TIME_DIM, L)


def _side_info_kernel(pe_ref, emb_ref, out_ref):
    """General path.
       pe_ref : (TIME_DIM, L_TILE)   sinusoid tile (resident across the batch loop)
       emb_ref: (EMB_DIM, K_TILE)    channel-major embedding tile (resident)
       out_ref: (B_TILE, C_OUT, K_TILE, L_TILE)
    """
    bt, _, kt, lt = out_ref.shape
    out_ref[:, 0:TIME_DIM, :, :] = jnp.broadcast_to(
        pe_ref[...][None, :, None, :], (bt, TIME_DIM, kt, lt)).astype(out_ref.dtype)
    out_ref[:, TIME_DIM:C_OUT, :, :] = jnp.broadcast_to(
        emb_ref[...][None, :, :, None], (bt, EMB_DIM, kt, lt)).astype(out_ref.dtype)


def _side_info_flat_kernel(pe_flat_ref, emb_flat_ref, out_ref):
    """Small-/awkward-L path: (K, L) flattened to N = K*L so stores are lane-dense.
       pe_flat_ref : (TIME_DIM, N), emb_flat_ref: (EMB_DIM, N), out_ref: (B_TILE, C_OUT, N)
    """
    bt, _, n = out_ref.shape
    out_ref[:, 0:TIME_DIM, :] = jnp.broadcast_to(
        pe_flat_ref[...][None], (bt, TIME_DIM, n)).astype(out_ref.dtype)
    out_ref[:, TIME_DIM:C_OUT, :] = jnp.broadcast_to(
        emb_flat_ref[...][None], (bt, EMB_DIM, n)).astype(out_ref.dtype)


def _pick_general_tiles(B, K, L, budget, dsize):
    """Budget-aware (B_TILE, K_TILE, L_TILE) for the general path."""
    def blk(kt, lt, bt=1):                       # double-buffered out-block bytes
        return 2 * bt * C_OUT * kt * lt * dsize

    if L % 128 == 0:
        l_cands = [m for m in range(L, 0, -128) if L % m == 0]   # 128-mult divisors, desc
    else:
        l_cands = [L]                            # full-extent tile is always legal

    k_tile, l_tile = K, None
    for lt in l_cands:                           # 1) keep K whole if any L tile fits
        if blk(K, lt) <= budget:
            l_tile = lt
            break
    if l_tile is None:                           # 2) tile K (multiple of 8) — v7x safety
        l_tile = l_cands[-1]
        if L % 128 != 0 and blk(8, l_tile) > budget:
            l_tile = 128                         # huge awkward L: partial 128-wide tiles
        k_tile = max(8, (budget // (2 * C_OUT * l_tile * dsize)) // 8 * 8)
        if k_tile >= K:
            k_tile = K
        # TODO(synk): if even (8, l_tile) overflows the budget the vmem_limit is bumped
        # below; only reachable for enormous non-128-multiple L with tiny VMEM.

    per_b = C_OUT * k_tile * l_tile * dsize      # 3) spend leftover budget on batch
    b_tile = _largest_divisor_leq(B, max(1, budget // (2 * per_b)))

    # 4) guarantee >= 2 grid steps so both v7x TensorCores get work
    if _cdiv(K, k_tile) * _cdiv(L, l_tile) * (B // b_tile) < 2:
        if B >= 2:
            b_tile = _largest_divisor_leq(B, B // 2)
        elif l_tile == L and L % 256 == 0:
            l_tile = L // 2
        elif k_tile == K and K >= 16:
            k_tile = max(8, ((K // 2) + 7) // 8 * 8)
    return b_tile, k_tile, l_tile


def side_info_forward(cond_mask, embed_table, out_dtype=jnp.float32):
    """Pallas implementation of SideInfo.forward.

    cond_mask  : (B, *, K, L)  (only its shape is used, as in the PyTorch module)
    embed_table: (num_nodes=K, 16) embedding weights
    returns    : (B, 144, K, L) in `out_dtype` (float32 by default, matching PyTorch)
    """
    B, _, K, L = cond_mask.shape
    num_nodes, emb_dim = embed_table.shape
    assert K == num_nodes, "cond_mask node dim must match the embedding table rows"
    assert emb_dim == EMB_DIM
    dsize = jnp.dtype(out_dtype).itemsize
    budget, vmem_limit = _device_budgets()

    pe = _sinusoid_table(L)                              # (128, L) f32 — tiny, one-time
    emb_ck = embed_table.T.astype(jnp.float32)           # (16, K) channel-major

    # ---------- small / awkward-L path: flatten (K, L) -> N for lane-dense stores -----
    flat_ok = (L % 128 != 0) and (2 * C_OUT * K * L * dsize <= budget)
    if flat_ok:
        N = K * L
        per_b = C_OUT * N * dsize
        b_tile = _largest_divisor_leq(B, max(1, budget // (2 * per_b)))
        if B >= 2 and B // b_tile < 2:                   # keep >= 2 steps for v7x
            b_tile = _largest_divisor_leq(B, B // 2)
        # NOTE: if K*L is not a multiple of 128 the tail lanes of each store are
        # masked — numerically fine, just slightly below the lane-dense ideal.
        pe_flat = jnp.tile(pe, (1, K))                   # (128, N): col k*L+l -> pe[:, l]
        emb_flat = jnp.repeat(emb_ck, L, axis=1)         # (16, N):  col k*L+l -> emb[:, k]
        out = pl.pallas_call(
            _side_info_flat_kernel,
            out_shape=jax.ShapeDtypeStruct((B, C_OUT, N), out_dtype),
            grid=(B // b_tile,),
            in_specs=[
                pl.BlockSpec((TIME_DIM, N), lambda b: (0, 0)),   # VMEM-resident
                pl.BlockSpec((EMB_DIM, N), lambda b: (0, 0)),    # VMEM-resident
            ],
            out_specs=pl.BlockSpec((b_tile, C_OUT, N), lambda b: (b, 0, 0)),
            compiler_params=pltpu.CompilerParams(
                dimension_semantics=("parallel",),
                vmem_limit_bytes=vmem_limit),
        )(pe_flat, emb_flat)
        # (B, 144, K*L) and (B, 144, K, L) are byte-identical row-major: free reshape.
        return out.reshape(B, C_OUT, K, L)

    # ---------- general path: tile (B, K, L), batch innermost ------------------------
    b_tile, k_tile, l_tile = _pick_general_tiles(B, K, L, budget, dsize)
    n_kt, n_lt, n_b = _cdiv(K, k_tile), _cdiv(L, l_tile), B // b_tile

    # Pre-block the embedding so its BlockSpec covers full extents of the last two
    # dims for ANY K_TILE (no (8,128) trouble, no in-kernel transpose).
    K_pad = n_kt * k_tile
    if K_pad != K:
        emb_ck = jnp.pad(emb_ck, ((0, 0), (0, K_pad - K)))
    emb_blk = emb_ck.reshape(EMB_DIM, n_kt, k_tile).transpose(1, 0, 2)  # (n_kt, 16, k_tile)

    need = (2 * b_tile * C_OUT * k_tile * l_tile * dsize
            + 2 * TIME_DIM * l_tile * 4 + 2 * EMB_DIM * k_tile * 4)
    vmem_limit = max(vmem_limit, need + (8 << 20))

    out = pl.pallas_call(
        _side_info_kernel,
        out_shape=jax.ShapeDtypeStruct((B, C_OUT, K, L), out_dtype),
        # batch is the innermost grid axis: pe/emb block indices are constant across
        # it, so their DMAs are skipped and only the output block moves per step.
        grid=(n_kt, n_lt, n_b),
        in_specs=[
            pl.BlockSpec((TIME_DIM, l_tile), lambda kt, lt, b: (0, lt)),
            pl.BlockSpec((None, EMB_DIM, k_tile), lambda kt, lt, b: (kt, 0, 0)),
        ],
        out_specs=pl.BlockSpec((b_tile, C_OUT, k_tile, l_tile),
                               lambda kt, lt, b: (b, 0, kt, lt)),
        compiler_params=pltpu.CompilerParams(
            dimension_semantics=("parallel", "parallel", "parallel"),
            vmem_limit_bytes=vmem_limit),
    )(pe, emb_blk)
    return out


def side_info_ref(cond_mask, embed_table):
    """Pure-JAX reference mirroring the PyTorch forward."""
    B, _, K, L = cond_mask.shape
    pos = jnp.arange(L, dtype=jnp.float32)
    div_term = 1.0 / jnp.power(
        jnp.float32(10000.0), jnp.arange(0, 128, 2, dtype=jnp.float32) / 128.0)
    pe = jnp.zeros((L, 128), jnp.float32)
    pe = pe.at[:, 0::2].set(jnp.sin(pos[:, None] * div_term[None, :]))
    pe = pe.at[:, 1::2].set(jnp.cos(pos[:, None] * div_term[None, :]))
    time_embed = jnp.broadcast_to(pe[None, :, None, :], (B, L, K, 128))
    feat = jnp.broadcast_to(
        embed_table[None, None, :, :].astype(jnp.float32), (B, L, K, EMB_DIM))
    side = jnp.concatenate([time_embed, feat], axis=-1)   # (B, L, K, 144)
    return jnp.transpose(side, (0, 3, 2, 1))               # (B, 144, K, L)


if __name__ == "__main__":
    key = jax.random.PRNGKey(0)
    k_emb, k_mask = jax.random.split(key)

    # Case 1: small / awkward L -> flattened lane-dense path (B=2, K=8, L=16)
    B, K, L = 2, 8, 16
    embed_table = jax.random.normal(k_emb, (K, EMB_DIM), dtype=jnp.float32)
    cond_mask = (jax.random.uniform(k_mask, (B, 1, K, L)) > 0.5).astype(jnp.float32)

    out = jax.block_until_ready(side_info_forward(cond_mask, embed_table))
    ref = jax.block_until_ready(side_info_ref(cond_mask, embed_table))
    assert out.shape == (B, C_OUT, K, L)
    np.testing.assert_allclose(np.asarray(out), np.asarray(ref), rtol=1e-5, atol=1e-5)

    # Case 2: lane-aligned L -> general path, batch-blocked grid (B=4, K=8, L=128)
    B2, K2, L2 = 4, 8, 128
    embed_table2 = jax.random.normal(k_emb, (K2, EMB_DIM), dtype=jnp.float32)
    cond_mask2 = jnp.zeros((B2, 1, K2, L2), jnp.float32)

    out2 = jax.block_until_ready(side_info_forward(cond_mask2, embed_table2))
    ref2 = jax.block_until_ready(side_info_ref(cond_mask2, embed_table2))
    assert out2.shape == (B2, C_OUT, K2, L2)
    np.testing.assert_allclose(np.asarray(out2), np.asarray(ref2), rtol=1e-5, atol=1e-5)

    print("KERNEL_OK")
</pallas_src>

<mosaic_0001>
module attributes {stable_mosaic.version = 11 : i64} {
  func.func @_side_info_flat_kernel(%arg0: i32, %arg1: memref<128x128xf32, #tpu.memory_space<vmem>>, %arg2: memref<16x128xf32, #tpu.memory_space<vmem>>, %arg3: memref<1x144x128xf32, #tpu.memory_space<vmem>>) attributes {dimension_semantics = [#tpu.dimension_semantics<parallel>], iteration_bounds = array<i64: 2>, scalar_prefetch = 0 : i64, scratch_operands = 0 : i64, tpu.core_type = #tpu.core_type<tc>, window_params = [{pipeline_mode = #tpu.pipeline_mode<synchronous>, transform_indices = @transform_0, window_bounds = array<i64: 128, 128>}, {pipeline_mode = #tpu.pipeline_mode<synchronous>, transform_indices = @transform_1, window_bounds = array<i64: 16, 128>}, {transform_indices = @transform_2, window_bounds = array<i64: 1, 144, 128>}]} {
    %c0 = arith.constant 0 : index
    %c0_0 = arith.constant 0 : index
    %0 = vector.load %arg1[%c0, %c0_0] : memref<128x128xf32, #tpu.memory_space<vmem>>, vector<128x128xf32>
    %1 = vector.shape_cast %0 : vector<128x128xf32> to vector<1x128x128xf32>
    %c0_1 = arith.constant 0 : index
    %c0_2 = arith.constant 0 : index
    %c0_3 = arith.constant 0 : index
    %2 = vector.load %arg3[%c0_1, %c0_2, %c0_3] : memref<1x144x128xf32, #tpu.memory_space<vmem>>, vector<1x128x128xf32>
    tpu.vector_store %arg3[%c0_1, %c0_2, %c0_3], %1 {strides = array<i32>} : memref<1x144x128xf32, #tpu.memory_space<vmem>>, vector<1x128x128xf32>,
    %c0_4 = arith.constant 0 : index
    %c0_5 = arith.constant 0 : index
    %3 = vector.load %arg2[%c0_4, %c0_5] : memref<16x128xf32, #tpu.memory_space<vmem>>, vector<16x128xf32>
    %4 = vector.shape_cast %3 : vector<16x128xf32> to vector<1x16x128xf32>
    %c0_6 = arith.constant 0 : index
    %c128 = arith.constant 128 : index
    %c0_7 = arith.constant 0 : index
    %5 = vector.load %arg3[%c0_6, %c128, %c0_7] : memref<1x144x128xf32, #tpu.memory_space<vmem>>, vector<1x16x128xf32>
    tpu.vector_store %arg3[%c0_6, %c128, %c0_7], %4 {strides = array<i32>} : memref<1x144x128xf32, #tpu.memory_space<vmem>>, vector<1x16x128xf32>,
    return
  }
  func.func @transform_0(%arg0: i32) -> (i32, i32) {
    %c0_i32 = arith.constant 0 : i32
    %c0_i32_0 = arith.constant 0 : i32
    %c0_i32_1 = arith.constant 0 : i32
    return %c0_i32, %c0_i32_0 : i32, i32
  }
  func.func @transform_1(%arg0: i32) -> (i32, i32) {
    %c0_i32 = arith.constant 0 : i32
    %c0_i32_0 = arith.constant 0 : i32
    %c0_i32_1 = arith.constant 0 : i32
    return %c0_i32, %c0_i32_0 : i32, i32
  }
  func.func @transform_2(%arg0: i32) -> (i32, i32, i32) {
    %c0_i32 = arith.constant 0 : i32
    %c0_i32_0 = arith.constant 0 : i32
    %c0_i32_1 = arith.constant 0 : i32
    return %arg0, %c0_i32, %c0_i32_0 : i32, i32, i32
  }
}

</mosaic_0001>

<llo_original>
// kernel: tpu_custom_call.1
$region0: #{tpu_custom_call.1}
  #allocation0 [shape = 'u32[]', space=smem, size = 0x4, offset = 0x4, fixed_abs, tag = 'smem constant byte address 0x4 - core index']
  #allocation1 [shape = 'u32[72,128]{1,0:T(1,128)}', space=vmem, size = 0x9000, scoped, tag = 'internal scratch']
  %s0 = inlined_call_operand.hbm [shape: f32[128,128], index: 0, kind: input, shape index: {}]
  %s1 = inlined_call_operand.hbm [shape: f32[16,128], index: 1, kind: input, shape index: {}]
  %s2 = inlined_call_operand.hbm [shape: f32[2,144,128], index: 2, kind: output, shape index: {}]
  %s3 = sld [smem:[#allocation0]]
  $region49: #{tpu_custom_call.1} parent=0
    _
  %s5 = ssub.s32 1, %s3
  %s6 = scalar_select 0, %s5, %s3
  $region1: #{tpu_custom_call.1} parent=0
    #allocation2 [shape = 'u8[65536]{0}', space=vmem, size = 0x10000, scoped, tag = 'input window, operand 0, single buffered']
    #allocation3 [shape = 's32[2]{0}', space=sflag, size = 0x8, scoped, tag = 'scoped memory for tpu_custom_call.1']
    #allocation4 [shape = 's32[2]{0}', space=sflag, size = 0x8, scoped, tag = 'scoped memory for tpu_custom_call.1']
    #allocation5 [shape = 'u8[8192]{0}', space=vmem, size = 0x2000, scoped, tag = 'input window, operand 1, single buffered']
    #allocation6 [shape = 's32[1]{0}', space=sflag, size = 0x4, scoped, tag = 'scoped memory for tpu_custom_call.1']
    #allocation7 [shape = 'u8[147456]{0}', space=vmem, size = 0x24000, scoped, tag = 'output window, operand 0']
    %7 = vsyncpa [#allocation3], 0
    %8 = vsyncpa [#allocation6], 0
    %9 = vsyncpa [#allocation4], 0
    %s10 = scalar_lea.sflag [#allocation4], 1
    %11 = vsyncpa %s10, 0
    loop: start=0, step=1, limit=4
    $region2: #{tpu_custom_call.1} parent=1 // loop_pre_header
      _
    $region3: #{tpu_custom_call.1} parent=1 // loop_header
      %s13 = sphi 0, %s17
      %p14 = scmp.ge.s32.totalorder %s13, 4
      %s21 = sphi 0, %s21
      %s23 = sphi 0, %s21
      %s24 = sphi 0, %s23
      %s38 = sphi 0, %s24
      %s42 = sphi 0, %s42
      %s44 = sphi 0, %s42
      %s45 = sphi 0, %s44
      %s59 = sphi 0, %s45
      %s65 = sphi 0, %s67
      %s68 = sphi 0, %s65
      %s69 = sphi 0, %s68
      %s85 = sphi 0, %s69
    $region4: #{tpu_custom_call.1} parent=1 // loop_header_branch
      %16 = sbr.rel (%p14) target = $region8
    $region5: #{tpu_custom_call.1} parent=1 // loop_body
      %s18 = ssub.s32 %s13, 1
      %s19 = ssub.s32 %s13, 2
      %s20 = sadd.s32 %s13, 1
      %s22 = sadd.s32 %s21, 1
      %p25 = scmp.eq.s32.totalorder %s13, 1
      %p26 = scmp.ne.s32.totalorder %s21, %s23
      %p27 = scmp.eq.s32.totalorder %s13, 0
      %p28 = por %p26, %p27
      %p29 = scmp.ne.s32.totalorder %s21, %s23
      %p30 = scmp.eq.s32.totalorder %s18, 1
      %p31 = por %p29, %p30
      %p32 = scmp.ne.s32.totalorder %s23, %s24
      %p33 = scmp.eq.s32.totalorder %s18, 0
      %p34 = por %p32, %p33
      %p35 = scmp.ne.s32.totalorder %s23, %s24
      %p36 = scmp.eq.s32.totalorder %s19, 1
      %p37 = por %p35, %p36
      %p39 = scmp.ne.s32.totalorder %s24, %s38
      %p40 = scmp.eq.s32.totalorder %s19, 0
      %p41 = por %p39, %p40
      %s43 = sadd.s32 %s42, 1
      %p46 = scmp.eq.s32.totalorder %s13, 1
      %p47 = scmp.ne.s32.totalorder %s42, %s44
      %p48 = scmp.eq.s32.totalorder %s13, 0
      %p49 = por %p47, %p48
      %p50 = scmp.ne.s32.totalorder %s42, %s44
      %p51 = scmp.eq.s32.totalorder %s18, 1
      %p52 = por %p50, %p51
      %p53 = scmp.ne.s32.totalorder %s44, %s45
      %p54 = scmp.eq.s32.totalorder %s18, 0
      %p55 = por %p53, %p54
      %p56 = scmp.ne.s32.totalorder %s44, %s45
      %p57 = scmp.eq.s32.totalorder %s19, 1
      %p58 = por %p56, %p57
      %p60 = scmp.ne.s32.totalorder %s45, %s59
      %p61 = scmp.eq.s32.totalorder %s19, 0
      %p62 = por %p60, %p61
      %s63 = ssub.s32 %s13, %s20
      %p64 = scmp.eq.s32.totalorder %s63, 0
      %s66 = sadd.s32 %s65, 1
      %s67 = scalar_select %p64, %s65, %s66
      %p70 = pneg %p64
      %p71 = scmp.eq.s32.totalorder %s13, 1
      %p72 = por %p70, %p71
      %p73 = scmp.ne.s32.totalorder %s65, %s68
      %p74 = scmp.eq.s32.totalorder %s13, 0
      %p75 = por %p73, %p74
      %p76 = scmp.ne.s32.totalorder %s65, %s68
      %p77 = scmp.eq.s32.totalorder %s18, 1
      %p78 = por %p76, %p77
      %p79 = scmp.ne.s32.totalorder %s68, %s69
      %p80 = scmp.eq.s32.totalorder %s18, 0
      %p81 = por %p79, %p80
      %p82 = scmp.ne.s32.totalorder %s68, %s69
      %p83 = scmp.eq.s32.totalorder %s19, 1
      %p84 = por %p82, %p83
      %p86 = scmp.ne.s32.totalorder %s69, %s85
      %p87 = scmp.eq.s32.totalorder %s19, 0
      %p88 = por %p86, %p87
      %p89 = scmp.le.s32.totalorder 1, %s13
      %p90 = scmp.lt.s32.totalorder %s13, 3
      %p91 = pnand %p89, %p90
      %p92 = pneg %p91
      // Predicated region
      $region9: #{tpu_custom_call.1} parent=5 // pred_check
        _
      $region10: #{tpu_custom_call.1} parent=5 // pred_check_branch
        %94 = sbr.rel (%p91) target = $region12
      $region11: #{tpu_custom_call.1} parent=5 // pred_region
        %s95 = ssub.s32 %s13, 1
        // Predicated region
        $region13: #{tpu_custom_call.1} parent=11 // pred_check
          %p96 = pneg %p34
        $region14: #{tpu_custom_call.1} parent=11 // pred_check_branch
          %98 = sbr.rel (%p96) target = $region16
        $region15: #{tpu_custom_call.1} parent=11 // pred_region
          %100 = vsyncadd [#allocation3], 0
          %s101 = sshll.u32 %s0, 4
          %s102 = int_to_ptr.hbm [resolvable:$true] %s101
          %s103 = sshll.u32 [#allocation2], 4
          %s104 = int_to_ptr.vmem [resolvable:$true] %s103
          %109 = dma.hbm_to_vmem [thread:$0]  %s102, 2048, %s104, [#allocation3], 128, 128, 8
        $region16: #{tpu_custom_call.1} parent=11 // pred_fallthru
          _
        // Predicated region
        $region17: #{tpu_custom_call.1} parent=11 // pred_check
          %p110 = pneg %p55
        $region18: #{tpu_custom_call.1} parent=11 // pred_check_branch
          %112 = sbr.rel (%p110) target = $region20
        $region19: #{tpu_custom_call.1} parent=11 // pred_region
          %114 = vsyncadd [#allocation6], 0
          %s115 = sshll.u32 %s1, 4
          %s116 = int_to_ptr.hbm [resolvable:$true] %s115
          %s117 = sshll.u32 [#allocation5], 4
          %s118 = int_to_ptr.vmem [resolvable:$true] %s117
          %123 = dma.hbm_to_vmem [thread:$0]  %s116, 256, %s118, [#allocation6], 128, 128, 8
        $region20: #{tpu_custom_call.1} parent=11 // pred_fallthru
          _
      $region12: #{tpu_custom_call.1} parent=5 // pred_fallthru
        _
      %p124 = scmp.lt.s32.totalorder %s13, 2
      // Predicated region
      $region21: #{tpu_custom_call.1} parent=5 // pred_check
        %p125 = pneg %p124
      $region22: #{tpu_custom_call.1} parent=5 // pred_check_branch
        %127 = sbr.rel (%p125) target = $region24
      $region23: #{tpu_custom_call.1} parent=5 // pred_region
        _
      $region24: #{tpu_custom_call.1} parent=5 // pred_fallthru
        _
      %p128 = scmp.le.s32.totalorder 1, %s13
      %p129 = scmp.lt.s32.totalorder %s13, 3
      %p130 = pnand %p128, %p129
      %p131 = pneg %p130
      // Predicated region
      $region25: #{tpu_custom_call.1} parent=5 // pred_check
        _
      $region26: #{tpu_custom_call.1} parent=5 // pred_check_branch
        %133 = sbr.rel (%p130) target = $region28
      $region27: #{tpu_custom_call.1} parent=5 // pred_region
        %s134 = ssub.s32 %s13, 1
        // Predicated region
        $region29: #{tpu_custom_call.1} parent=27 // pred_check
          %p135 = pneg %p34
        $region30: #{tpu_custom_call.1} parent=27 // pred_check_branch
          %137 = sbr.rel (%p135) target = $region32
        $region31: #{tpu_custom_call.1} parent=27 // pred_region
          %139 = dma.done [#allocation3], 2048
        $region32: #{tpu_custom_call.1} parent=27 // pred_fallthru
          _
        // Predicated region
        $region33: #{tpu_custom_call.1} parent=27 // pred_check
          %p140 = pneg %p55
        $region34: #{tpu_custom_call.1} parent=27 // pred_check_branch
          %142 = sbr.rel (%p140) target = $region36
        $region35: #{tpu_custom_call.1} parent=27 // pred_region
          %144 = dma.done [#allocation6], 256
        $region36: #{tpu_custom_call.1} parent=27 // pred_fallthru
          _
        %p145 = pneg %p34
        %p146 = pneg %p31
        %p147 = pneg %p55
        %p148 = pneg %p52
        %p149 = pneg %p81
        %p150 = pneg %p78
        %s151 = sand.u32 %s68, 1
        %s152 = scalar_lea.sflag [#allocation4], %s151
        %s153 = sand.u32 %s68, 1
        %s154 = smul.addr %s153, 144
        %s155 = scalar_lea.vmem [#allocation7], %s154
        %v156 = vld [vmem:[#allocation2] sm:$0xff]
        %v157 = vld [vmem:[#allocation2 + $0x8] sm:$0xff]
        %v158 = vld [vmem:[#allocation2 + $0x10] sm:$0xff]
        %v159 = vld [vmem:[#allocation2 + $0x18] sm:$0xff]
        %v160 = vld [vmem:[#allocation2 + $0x20] sm:$0xff]
        %v161 = vld [vmem:[#allocation2 + $0x28] sm:$0xff]
        %v162 = vld [vmem:[#allocation2 + $0x30] sm:$0xff]
        %v163 = vld [vmem:[#allocation2 + $0x38] sm:$0xff]
        %v164 = vld [vmem:[#allocation2 + $0x40] sm:$0xff]
        %v165 = vld [vmem:[#allocation2 + $0x48] sm:$0xff]
        %v166 = vld [vmem:[#allocation2 + $0x50] sm:$0xff]
        %v167 = vld [vmem:[#allocation2 + $0x58] sm:$0xff]
        %v168 = vld [vmem:[#allocation2 + $0x60] sm:$0xff]
        %v169 = vld [vmem:[#allocation2 + $0x68] sm:$0xff]
        %v170 = vld [vmem:[#allocation2 + $0x70] sm:$0xff]
        %v171 = vld [vmem:[#allocation2 + $0x78] sm:$0xff]
        %172 = vst [vmem:[%s155] sm:$0xff] %v156
        %173 = vst [vmem:[%s155 + $0x8] sm:$0xff] %v157
        %174 = vst [vmem:[%s155 + $0x10] sm:$0xff] %v158
        %175 = vst [vmem:[%s155 + $0x18] sm:$0xff] %v159
        %176 = vst [vmem:[%s155 + $0x20] sm:$0xff] %v160
        %177 = vst [vmem:[%s155 + $0x28] sm:$0xff] %v161
        %178 = vst [vmem:[%s155 + $0x30] sm:$0xff] %v162
        %179 = vst [vmem:[%s155 + $0x38] sm:$0xff] %v163
        %180 = vst [vmem:[%s155 + $0x40] sm:$0xff] %v164
        %181 = vst [vmem:[%s155 + $0x48] sm:$0xff] %v165
        %182 = vst [vmem:[%s155 + $0x50] sm:$0xff] %v166
        %183 = vst [vmem:[%s155 + $0x58] sm:$0xff] %v167
        %184 = vst [vmem:[%s155 + $0x60] sm:$0xff] %v168
        %185 = vst [vmem:[%s155 + $0x68] sm:$0xff] %v169
        %186 = vst [vmem:[%s155 + $0x70] sm:$0xff] %v170
        %187 = vst [vmem:[%s155 + $0x78] sm:$0xff] %v171
        %v188 = vld [vmem:[#allocation5] sm:$0xff]
        %v189 = vld [vmem:[#allocation5 + $0x8] sm:$0xff]
        %190 = vst [vmem:[%s155 + $0x80] sm:$0xff] %v188
        %191 = vst [vmem:[%s155 + $0x88] sm:$0xff] %v189
        %s192 = sand.u32 %s68, 1
        %s193 = scalar_lea.sflag [#allocation4], %s192
        %s194 = sand.u32 %s68, 1
        %s195 = smul.addr %s194, 144
        %s196 = scalar_lea.vmem [#allocation7], %s195
        // Predicated region
        $region37: #{tpu_custom_call.1} parent=27 // pred_check
          %p197 = pneg %p78
        $region38: #{tpu_custom_call.1} parent=27 // pred_check_branch
          %199 = sbr.rel (%p197) target = $region40
        $region39: #{tpu_custom_call.1} parent=27 // pred_region
          %201 = vsyncadd %s193, 0
          %s202 = smul.addr %s18, 18
          %s203 = smul.addr %s202, 8
          %s204 = scalar_lea.hbm %s2, %s203
          %s205 = sshll.u32 %s196, 4
          %s206 = int_to_ptr.vmem [resolvable:$true] %s205
          %s207 = sshll.u32 %s204, 4
          %s208 = int_to_ptr.hbm [resolvable:$true] %s207
          %213 = dma.vmem_to_hbm [thread:$0]  %s206, 2304, %s208, %s193, 128, 128, 8
        $region40: #{tpu_custom_call.1} parent=27 // pred_fallthru
          _
      $region28: #{tpu_custom_call.1} parent=5 // pred_fallthru
        _
      %p214 = scmp.le.s32.totalorder 2, %s13
      // Predicated region
      $region41: #{tpu_custom_call.1} parent=5 // pred_check
        %p215 = pneg %p214
      $region42: #{tpu_custom_call.1} parent=5 // pred_check_branch
        %217 = sbr.rel (%p215) target = $region44
      $region43: #{tpu_custom_call.1} parent=5 // pred_region
        %s218 = ssub.s32 %s13, 2
        // Predicated region
        $region45: #{tpu_custom_call.1} parent=43 // pred_check
          %p219 = pneg %p84
        $region46: #{tpu_custom_call.1} parent=43 // pred_check_branch
          %221 = sbr.rel (%p219) target = $region48
        $region47: #{tpu_custom_call.1} parent=43 // pred_region
          %s222 = sand.u32 %s69, 1
          %s223 = scalar_lea.sflag [#allocation4], %s222
          %s224 = sand.u32 %s69, 1
          %s225 = smul.addr %s224, 144
          %s226 = scalar_lea.vmem [#allocation7], %s225
          %228 = dma.done %s223, 2304
        $region48: #{tpu_custom_call.1} parent=43 // pred_fallthru
          _
      $region44: #{tpu_custom_call.1} parent=5 // pred_fallthru
        _
    $region6: #{tpu_custom_call.1} parent=1 // loop_footer
      %s17 = sadd.s32 1, %s13
    $region7: #{tpu_custom_call.1} parent=1 // loop_footer_branch
      %12 = sbr.rel target = $region3
    $region8: #{tpu_custom_call.1} parent=1 // loop_exit
      _
    %229 = vsyncpa [#allocation3], 1
    %s230 = scalar_lea.sflag [#allocation3], 1
    %231 = vsyncpa %s230, 1
    %232 = vsyncpa [#allocation6], 1
    %233 = vsyncpa [#allocation4], 1
    %s234 = scalar_lea.sflag [#allocation4], 1
    %235 = vsyncpa %s234, 1

</llo_original>
